<compile_context>
chip_gen: v5e
topology: v5e:2x2
jax: 0.10.0
libtpu: 0.0.40
codegen_flags: <defaults>
</compile_context>

<pallas_src>
import jax
import jax.numpy as jnp
from jax.experimental import pallas as pl
from jax.experimental.pallas import tpu as pltpu

OBS_NUM = 2        # MountainCar-v0 observation dim
ACT_NUM = 3        # MountainCar-v0 action count
HIDDEN = 32        # settings.HIDDEN_SIZE
NUM_LAYERS = 4

PAD_K = 32         # padded contraction dim (multiple of 8 sublanes; holds obs & hidden)
PAD_N = 128        # padded output/lane dim (multiple of 128 lanes)
TILE_B_MAX = 256   # batch rows per grid step


def _round_up(n, m):
    return ((n + m - 1) // m) * m


def _mlp_kernel(x_ref, w_ref, b_ref, o_ref):
    """Whole 4-layer MLP for one batch tile; weight slab stays VMEM-resident."""
    h = x_ref[...]                                     # (tile_b, PAD_K) bf16
    acc = None
    for layer in range(NUM_LAYERS):
        acc = jnp.dot(h, w_ref[layer],                 # MXU: bf16 x bf16 -> f32
                      preferred_element_type=jnp.float32)
        acc = jnp.maximum(acc + b_ref[layer], 0.0)     # f32 bias add + ReLU (VPU)
        if layer < NUM_LAYERS - 1:
            # Only the first HIDDEN lanes are valid (the rest are exactly zero
            # from zero-padded weights/bias + ReLU); re-narrow K to 32 and
            # drop to bf16 for the next MXU pass.
            h = acc[:, :HIDDEN].astype(jnp.bfloat16)
    o_ref[...] = acc.astype(o_ref.dtype)


def init_params(key):
    """PyTorch nn.Linear-style init: U(-1/sqrt(fan_in), 1/sqrt(fan_in))."""
    dims = [(OBS_NUM, HIDDEN), (HIDDEN, HIDDEN), (HIDDEN, HIDDEN), (HIDDEN, ACT_NUM)]
    params = []
    for fan_in, fan_out in dims:
        key, kw, kb = jax.random.split(key, 3)
        bound = 1.0 / jnp.sqrt(jnp.float32(fan_in))
        w = jax.random.uniform(kw, (fan_out, fan_in), jnp.float32, -bound, bound)
        b = jax.random.uniform(kb, (fan_out,), jnp.float32, -bound, bound)
        params.append((w, b))
    return params


def prepare_params(params):
    """One-time packing: transpose, zero-pad, stack and cast for the kernel.

    Returns:
      w_slab: (4, PAD_K, PAD_N) bfloat16  (y = x @ W layout)
      b_slab: (4, 1, PAD_N)     float32
    """
    ws, bs = [], []
    for w, b in params:                     # w: (out, in), b: (out,)
        wt = w.T.astype(jnp.float32)        # (in, out)
        k, n = wt.shape
        ws.append(jnp.pad(wt, ((0, PAD_K - k), (0, PAD_N - n))))
        bs.append(jnp.pad(b.astype(jnp.float32), (0, PAD_N - n))[None, :])
    w_slab = jnp.stack(ws).astype(jnp.bfloat16)   # (4, PAD_K, PAD_N)
    b_slab = jnp.stack(bs)                        # (4, 1, PAD_N) f32
    return w_slab, b_slab


@jax.jit
def nn_forward(x, w_slab, b_slab):
    """x: (B, OBS_NUM) float32 -> (B, ACT_NUM) float32."""
    B = x.shape[0]
    tile_b = min(TILE_B_MAX, _round_up(B, 8))
    b_pad = _round_up(B, tile_b)

    xp = jnp.pad(x.astype(jnp.float32),
                 ((0, b_pad - B), (0, PAD_K - OBS_NUM))).astype(jnp.bfloat16)

    out = pl.pallas_call(
        _mlp_kernel,
        out_shape=jax.ShapeDtypeStruct((b_pad, PAD_N), jnp.float32),
        grid=(b_pad // tile_b,),
        in_specs=[
            pl.BlockSpec((tile_b, PAD_K), lambda i: (i, 0)),
            pl.BlockSpec((NUM_LAYERS, PAD_K, PAD_N), lambda i: (0, 0, 0)),
            pl.BlockSpec((NUM_LAYERS, 1, PAD_N), lambda i: (0, 0, 0)),
        ],
        out_specs=pl.BlockSpec((tile_b, PAD_N), lambda i: (i, 0)),
        compiler_params=pltpu.CompilerParams(
            dimension_semantics=("parallel",)),   # batch tiles across v7x's 2 TCs
    )(xp, w_slab, b_slab)

    # TODO(synk): for a pure action-selection path, an in-kernel argmax over the
    # ACT_NUM valid lanes could replace this padded writeback + XLA slice.
    return out[:B, :ACT_NUM]


def reference_forward_f32(x, params):
    h = x
    for w, b in params:
        h = jnp.maximum(h @ w.T + b, 0.0)
    return h


def reference_forward_bf16(x, params):
    """Matches the kernel's precision policy (bf16 operands, f32 accumulate)."""
    h = x.astype(jnp.float32)
    for w, b in params:
        z = jnp.dot(h.astype(jnp.bfloat16), w.T.astype(jnp.bfloat16),
                    preferred_element_type=jnp.float32) + b
        h = jnp.maximum(z, 0.0)
    return h


if __name__ == "__main__":
    key = jax.random.PRNGKey(0)
    key, kx1, kx2 = jax.random.split(key, 3)
    params = init_params(key)
    w_slab, b_slab = prepare_params(params)   # one-time, hoisted out of forward

    # Small batch (single-tile path, like per-step RL inference).
    x_small = jax.random.normal(kx1, (2, OBS_NUM), jnp.float32)
    y_small = jax.block_until_ready(nn_forward(x_small, w_slab, b_slab))
    assert y_small.shape == (2, ACT_NUM)
    assert jnp.allclose(y_small, reference_forward_bf16(x_small, params),
                        atol=1e-3, rtol=1e-3)
    assert jnp.allclose(y_small, reference_forward_f32(x_small, params),
                        atol=5e-2, rtol=5e-2)

    # Larger batch (exercises the batch grid: 300 rows -> 2 tiles of 256).
    x_big = jax.random.normal(kx2, (300, OBS_NUM), jnp.float32)
    y_big = jax.block_until_ready(nn_forward(x_big, w_slab, b_slab))
    assert y_big.shape == (300, ACT_NUM)
    assert jnp.allclose(y_big, reference_forward_bf16(x_big, params),
                        atol=1e-3, rtol=1e-3)

    print("KERNEL_OK")
</pallas_src>

<mosaic_0001>
module attributes {stable_mosaic.version = 11 : i64} {
  func.func @_mlp_kernel(%arg0: i32, %arg1: memref<8x32xbf16, #tpu.memory_space<vmem>>, %arg2: memref<4x32x128xbf16, #tpu.memory_space<vmem>>, %arg3: memref<4x1x128xf32, #tpu.memory_space<vmem>>, %arg4: memref<8x128xf32, #tpu.memory_space<vmem>>) attributes {dimension_semantics = [#tpu.dimension_semantics<parallel>], iteration_bounds = array<i64: 1>, scalar_prefetch = 0 : i64, scratch_operands = 0 : i64, tpu.core_type = #tpu.core_type<tc>, window_params = [{transform_indices = @transform_0, window_bounds = array<i64: 8, 32>}, {pipeline_mode = #tpu.pipeline_mode<synchronous>, transform_indices = @transform_1, window_bounds = array<i64: 4, 32, 128>}, {pipeline_mode = #tpu.pipeline_mode<synchronous>, transform_indices = @transform_2, window_bounds = array<i64: 4, 1, 128>}, {transform_indices = @transform_3, window_bounds = array<i64: 8, 128>}]} {
    %c0 = arith.constant 0 : index
    %c0_0 = arith.constant 0 : index
    %0 = vector.load %arg1[%c0, %c0_0] : memref<8x32xbf16, #tpu.memory_space<vmem>>, vector<8x32xbf16>
    %c0_1 = arith.constant 0 : index
    %c0_2 = arith.constant 0 : index
    %c0_3 = arith.constant 0 : index
    %1 = vector.load %arg2[%c0_1, %c0_2, %c0_3] : memref<4x32x128xbf16, #tpu.memory_space<vmem>>, vector<1x32x128xbf16>
    %2 = vector.shape_cast %1 : vector<1x32x128xbf16> to vector<32x128xbf16>
    %cst = arith.constant dense<0.000000e+00> : vector<8x128xf32>
    %3 = tpu.matmul %0, %2, %cst {dimension_numbers = #tpu.dot_dimension_numbers<[1], [0], [0], [1], [0, 0, 1, 1], [], []>} : vector<8x32xbf16>, vector<32x128xbf16>, vector<8x128xf32> -> vector<8x128xf32>
    %c0_4 = arith.constant 0 : index
    %c0_5 = arith.constant 0 : index
    %c0_6 = arith.constant 0 : index
    %4 = vector.load %arg3[%c0_4, %c0_5, %c0_6] : memref<4x1x128xf32, #tpu.memory_space<vmem>>, vector<1x1x128xf32>
    %5 = vector.shape_cast %4 : vector<1x1x128xf32> to vector<1x128xf32>
    %6 = vector.broadcast %5 : vector<1x128xf32> to vector<8x128xf32>
    %7 = arith.addf %3, %6 : vector<8x128xf32>
    %cst_7 = arith.constant 0.000000e+00 : f32
    %8 = vector.broadcast %cst_7 : f32 to vector<8x128xf32>
    %9 = arith.maximumf %7, %8 : vector<8x128xf32>
    %10 = vector.extract_strided_slice %9 {offsets = [0, 0], sizes = [8, 32], strides = [1, 1]} : vector<8x128xf32> to vector<8x32xf32>
    %11 = arith.truncf %10 : vector<8x32xf32> to vector<8x32xbf16>
    %c1 = arith.constant 1 : index
    %c0_8 = arith.constant 0 : index
    %c0_9 = arith.constant 0 : index
    %12 = vector.load %arg2[%c1, %c0_8, %c0_9] : memref<4x32x128xbf16, #tpu.memory_space<vmem>>, vector<1x32x128xbf16>
    %13 = vector.shape_cast %12 : vector<1x32x128xbf16> to vector<32x128xbf16>
    %cst_10 = arith.constant dense<0.000000e+00> : vector<8x128xf32>
    %14 = tpu.matmul %11, %13, %cst_10 {dimension_numbers = #tpu.dot_dimension_numbers<[1], [0], [0], [1], [0, 0, 1, 1], [], []>} : vector<8x32xbf16>, vector<32x128xbf16>, vector<8x128xf32> -> vector<8x128xf32>
    %c1_11 = arith.constant 1 : index
    %c0_12 = arith.constant 0 : index
    %c0_13 = arith.constant 0 : index
    %15 = vector.load %arg3[%c1_11, %c0_12, %c0_13] : memref<4x1x128xf32, #tpu.memory_space<vmem>>, vector<1x1x128xf32>
    %16 = vector.shape_cast %15 : vector<1x1x128xf32> to vector<1x128xf32>
    %17 = vector.broadcast %16 : vector<1x128xf32> to vector<8x128xf32>
    %18 = arith.addf %14, %17 : vector<8x128xf32>
    %cst_14 = arith.constant 0.000000e+00 : f32
    %19 = vector.broadcast %cst_14 : f32 to vector<8x128xf32>
    %20 = arith.maximumf %18, %19 : vector<8x128xf32>
    %21 = vector.extract_strided_slice %20 {offsets = [0, 0], sizes = [8, 32], strides = [1, 1]} : vector<8x128xf32> to vector<8x32xf32>
    %22 = arith.truncf %21 : vector<8x32xf32> to vector<8x32xbf16>
    %c2 = arith.constant 2 : index
    %c0_15 = arith.constant 0 : index
    %c0_16 = arith.constant 0 : index
    %23 = vector.load %arg2[%c2, %c0_15, %c0_16] : memref<4x32x128xbf16, #tpu.memory_space<vmem>>, vector<1x32x128xbf16>
    %24 = vector.shape_cast %23 : vector<1x32x128xbf16> to vector<32x128xbf16>
    %cst_17 = arith.constant dense<0.000000e+00> : vector<8x128xf32>
    %25 = tpu.matmul %22, %24, %cst_17 {dimension_numbers = #tpu.dot_dimension_numbers<[1], [0], [0], [1], [0, 0, 1, 1], [], []>} : vector<8x32xbf16>, vector<32x128xbf16>, vector<8x128xf32> -> vector<8x128xf32>
    %c2_18 = arith.constant 2 : index
    %c0_19 = arith.constant 0 : index
    %c0_20 = arith.constant 0 : index
    %26 = vector.load %arg3[%c2_18, %c0_19, %c0_20] : memref<4x1x128xf32, #tpu.memory_space<vmem>>, vector<1x1x128xf32>
    %27 = vector.shape_cast %26 : vector<1x1x128xf32> to vector<1x128xf32>
    %28 = vector.broadcast %27 : vector<1x128xf32> to vector<8x128xf32>
    %29 = arith.addf %25, %28 : vector<8x128xf32>
    %cst_21 = arith.constant 0.000000e+00 : f32
    %30 = vector.broadcast %cst_21 : f32 to vector<8x128xf32>
    %31 = arith.maximumf %29, %30 : vector<8x128xf32>
    %32 = vector.extract_strided_slice %31 {offsets = [0, 0], sizes = [8, 32], strides = [1, 1]} : vector<8x128xf32> to vector<8x32xf32>
    %33 = arith.truncf %32 : vector<8x32xf32> to vector<8x32xbf16>
    %c3 = arith.constant 3 : index
    %c0_22 = arith.constant 0 : index
    %c0_23 = arith.constant 0 : index
    %34 = vector.load %arg2[%c3, %c0_22, %c0_23] : memref<4x32x128xbf16, #tpu.memory_space<vmem>>, vector<1x32x128xbf16>
    %35 = vector.shape_cast %34 : vector<1x32x128xbf16> to vector<32x128xbf16>
    %cst_24 = arith.constant dense<0.000000e+00> : vector<8x128xf32>
    %36 = tpu.matmul %33, %35, %cst_24 {dimension_numbers = #tpu.dot_dimension_numbers<[1], [0], [0], [1], [0, 0, 1, 1], [], []>} : vector<8x32xbf16>, vector<32x128xbf16>, vector<8x128xf32> -> vector<8x128xf32>
    %c3_25 = arith.constant 3 : index
    %c0_26 = arith.constant 0 : index
    %c0_27 = arith.constant 0 : index
    %37 = vector.load %arg3[%c3_25, %c0_26, %c0_27] : memref<4x1x128xf32, #tpu.memory_space<vmem>>, vector<1x1x128xf32>
    %38 = vector.shape_cast %37 : vector<1x1x128xf32> to vector<1x128xf32>
    %39 = vector.broadcast %38 : vector<1x128xf32> to vector<8x128xf32>
    %40 = arith.addf %36, %39 : vector<8x128xf32>
    %cst_28 = arith.constant 0.000000e+00 : f32
    %41 = vector.broadcast %cst_28 : f32 to vector<8x128xf32>
    %42 = arith.maximumf %40, %41 : vector<8x128xf32>
    %c0_29 = arith.constant 0 : index
    %c0_30 = arith.constant 0 : index
    %43 = vector.load %arg4[%c0_29, %c0_30] : memref<8x128xf32, #tpu.memory_space<vmem>>, vector<8x128xf32>
    tpu.vector_store %arg4[%c0_29, %c0_30], %42 {strides = array<i32>} : memref<8x128xf32, #tpu.memory_space<vmem>>, vector<8x128xf32>,
    return
  }
  func.func @transform_0(%arg0: i32) -> (i32, i32) {
    %c0_i32 = arith.constant 0 : i32
    %c0_i32_0 = arith.constant 0 : i32
    return %arg0, %c0_i32 : i32, i32
  }
  func.func @transform_1(%arg0: i32) -> (i32, i32, i32) {
    %c0_i32 = arith.constant 0 : i32
    %c0_i32_0 = arith.constant 0 : i32
    %c0_i32_1 = arith.constant 0 : i32
    %c0_i32_2 = arith.constant 0 : i32
    return %c0_i32, %c0_i32_0, %c0_i32_1 : i32, i32, i32
  }
  func.func @transform_2(%arg0: i32) -> (i32, i32, i32) {
    %c0_i32 = arith.constant 0 : i32
    %c0_i32_0 = arith.constant 0 : i32
    %c0_i32_1 = arith.constant 0 : i32
    %c0_i32_2 = arith.constant 0 : i32
    return %c0_i32, %c0_i32_0, %c0_i32_1 : i32, i32, i32
  }
  func.func @transform_3(%arg0: i32) -> (i32, i32) {
    %c0_i32 = arith.constant 0 : i32
    %c0_i32_0 = arith.constant 0 : i32
    return %arg0, %c0_i32 : i32, i32
  }
}

</mosaic_0001>

<llo_original>
// kernel: nn_forward.1
$region0: #{nn_forward.1}
  #allocation0 [shape = 'u32[]', space=smem, size = 0x4, offset = 0x4, fixed_abs, tag = 'smem constant byte address 0x4 - core index']
  #allocation1 [shape = 'u32[72,128]{1,0:T(1,128)}', space=vmem, size = 0x9000, scoped, tag = 'internal scratch']
  %s0 = inlined_call_operand.vmem [shape: bf16[8,32], index: 0, kind: input, shape index: {}]
  %s1 = inlined_call_operand.hbm [shape: bf16[4,32,128], index: 1, kind: input, shape index: {}]
  %s2 = inlined_call_operand.vmem [shape: f32[4,1,128], index: 2, kind: input, shape index: {}]
  %s3 = inlined_call_operand.vmem [shape: f32[8,128], index: 3, kind: output, shape index: {}]
  %s4 = sld [smem:[#allocation0]]
  $region26: #{nn_forward.1} parent=0
    _
  %s6 = ssub.s32 1, %s4
  %s7 = scalar_select 0, %s6, %s4
  $region1: #{nn_forward.1} parent=0
    #allocation2 [shape = 'u8[32768]{0}', space=vmem, size = 0x8000, scoped, tag = 'input window, operand 1, single buffered']
    #allocation3 [shape = 's32[1]{0}', space=sflag, size = 0x4, scoped, tag = 'scoped memory for nn_forward.1']
    %8 = vsyncpa [#allocation3], 0
    // Predicated region
    $region2: #{nn_forward.1} parent=1 // pred_check
      _
    $region3: #{nn_forward.1} parent=1 // pred_check_branch
      %10 = sbr.rel (0) target = $region5
    $region4: #{nn_forward.1} parent=1 // pred_region
      _
    $region5: #{nn_forward.1} parent=1 // pred_fallthru
      _
    // Predicated region
    $region6: #{nn_forward.1} parent=1 // pred_check
      _
    $region7: #{nn_forward.1} parent=1 // pred_check_branch
      %12 = sbr.rel (0) target = $region9
    $region8: #{nn_forward.1} parent=1 // pred_region
      %14 = vsyncadd [#allocation3], 0
      %s15 = sshll.u32 %s1, 4
      %s16 = int_to_ptr.hbm [resolvable:$true] %s15
      %s17 = sshll.u32 [#allocation2], 4
      %s18 = int_to_ptr.vmem [resolvable:$true] %s17
      %23 = dma.hbm_to_vmem [thread:$0]  %s16, 1024, %s18, [#allocation3], 64, 64, 4
    $region9: #{nn_forward.1} parent=1 // pred_fallthru
      _
    // Predicated region
    $region10: #{nn_forward.1} parent=1 // pred_check
      _
    $region11: #{nn_forward.1} parent=1 // pred_check_branch
      %25 = sbr.rel (0) target = $region13
    $region12: #{nn_forward.1} parent=1 // pred_region
      _
    $region13: #{nn_forward.1} parent=1 // pred_fallthru
      _
    // Predicated region
    $region14: #{nn_forward.1} parent=1 // pred_check
      _
    $region15: #{nn_forward.1} parent=1 // pred_check_branch
      %27 = sbr.rel (0) target = $region17
    $region16: #{nn_forward.1} parent=1 // pred_region
      %29 = dma.done [#allocation3], 1024
    $region17: #{nn_forward.1} parent=1 // pred_fallthru
      _
    %v31 = vld [vmem:[%s0] sm:$0xf]
    %v32 = vld [vmem:[#allocation2] sm:$0xf]
    %v33 = vld [vmem:[#allocation2 + $0x4] sm:$0xf]
    %v34 = vld [vmem:[#allocation2 + $0x8] sm:$0xf]
    %v35 = vld [vmem:[#allocation2 + $0xc] sm:$0xf]
    %v36 = vld [vmem:[%s2] sm:$0x1]
    %v38 = vperm.slane %v36, 0
    %v44 = vunpack.c.l.b16 %v32
    %v45 = vunpack.c.l.b16 %v33
    %v46 = vunpack.c.l.b16 %v34
    %v47 = vunpack.c.l.b16 %v35
    %v48 = vpack.c.b16 %v45, %v44
    %v49 = vpack.c.b16 %v47, %v46
    %vm52 = vcmask 261120
    %v54 = vsel %vm52, %v31, 0
    %56 = vmatpush.bf16.msra.mxu0 0
    %57 = vmatpush.bf16.msra.mxu0 0
    %58 = vmatpush.bf16.msra.mxu0 0
    %59 = vmatpush.bf16.msra.mxu0 0
    %60 = vmatpush.bf16.msra.mxu0 0
    %61 = vmatpush.bf16.msra.mxu0 0
    %62 = vmatpush.bf16.msra.mxu0 %v49
    %63 = vmatpush.bf16.msra.mxu0 %v48
    %64 = vmatmul.bf16.gmra.mxu0 %v54
    %v65 = vpop.f32.mrf.mxu0
    %v66 = vadd.f32 %v38, %v65
    %v67 = vpop.f32.mrf.mxu0
    %68 = vdwg.mxu0
    %v69 = vmax.f32 %v66, 0.0
    %v70 = vpack.c.bf16 %v69, %v69
    %s71 = scalar_lea.vmem [#allocation2], 16
    %v72 = vld [vmem:[%s71] sm:$0xf]
    %v73 = vld [vmem:[%s71 + $0x4] sm:$0xf]
    %v74 = vld [vmem:[%s71 + $0x8] sm:$0xf]
    %v75 = vld [vmem:[%s71 + $0xc] sm:$0xf]
    %s76 = scalar_lea.vmem %s2, 1
    %v77 = vld [vmem:[%s76] sm:$0x1]
    %v79 = vperm.slane %v77, 0
    %v85 = vunpack.c.l.b16 %v72
    %v86 = vunpack.c.l.b16 %v73
    %v87 = vunpack.c.l.b16 %v74
    %v88 = vunpack.c.l.b16 %v75
    %v89 = vpack.c.b16 %v86, %v85
    %v90 = vpack.c.b16 %v88, %v87
    %v94 = vsel %vm52, %v70, 0
    %96 = vmatpush.bf16.msra.mxu0 0
    %97 = vmatpush.bf16.msra.mxu0 0
    %98 = vmatpush.bf16.msra.mxu0 0
    %99 = vmatpush.bf16.msra.mxu0 0
    %100 = vmatpush.bf16.msra.mxu0 0
    %101 = vmatpush.bf16.msra.mxu0 0
    %102 = vmatpush.bf16.msra.mxu0 %v90
    %103 = vmatpush.bf16.msra.mxu0 %v89
    %104 = vmatmul.bf16.gmra.mxu0 %v94
    %v105 = vpop.f32.mrf.mxu0
    %v106 = vadd.f32 %v79, %v105
    %v107 = vpop.f32.mrf.mxu0
    %108 = vdwg.mxu0
    %v109 = vmax.f32 %v106, 0.0
    %v110 = vpack.c.bf16 %v109, %v109
    %s111 = scalar_lea.vmem [#allocation2], 32
    %v112 = vld [vmem:[%s111] sm:$0xf]
    %v113 = vld [vmem:[%s111 + $0x4] sm:$0xf]
    %v114 = vld [vmem:[%s111 + $0x8] sm:$0xf]
    %v115 = vld [vmem:[%s111 + $0xc] sm:$0xf]
    %s116 = scalar_lea.vmem %s2, 2
    %v117 = vld [vmem:[%s116] sm:$0x1]
    %v119 = vperm.slane %v117, 0
    %v125 = vunpack.c.l.b16 %v112
    %v126 = vunpack.c.l.b16 %v113
    %v127 = vunpack.c.l.b16 %v114
    %v128 = vunpack.c.l.b16 %v115
    %v129 = vpack.c.b16 %v126, %v125
    %v130 = vpack.c.b16 %v128, %v127
    %v134 = vsel %vm52, %v110, 0
    %136 = vmatpush.bf16.msra.mxu0 0
    %137 = vmatpush.bf16.msra.mxu0 0
    %138 = vmatpush.bf16.msra.mxu0 0
    %139 = vmatpush.bf16.msra.mxu0 0
    %140 = vmatpush.bf16.msra.mxu0 0
    %141 = vmatpush.bf16.msra.mxu0 0
    %142 = vmatpush.bf16.msra.mxu0 %v130
    %143 = vmatpush.bf16.msra.mxu0 %v129
    %144 = vmatmul.bf16.gmra.mxu0 %v134
    %v145 = vpop.f32.mrf.mxu0
    %v146 = vadd.f32 %v119, %v145
    %v147 = vpop.f32.mrf.mxu0
    %148 = vdwg.mxu0
    %v149 = vmax.f32 %v146, 0.0
    %v150 = vpack.c.bf16 %v149, %v149
    %s151 = scalar_lea.vmem [#allocation2], 48
    %v152 = vld [vmem:[%s151] sm:$0xf]
    %v153 = vld [vmem:[%s151 + $0x4] sm:$0xf]
    %v154 = vld [vmem:[%s151 + $0x8] sm:$0xf]
    %v155 = vld [vmem:[%s151 + $0xc] sm:$0xf]
    %s156 = scalar_lea.vmem %s2, 3
    %v157 = vld [vmem:[%s156] sm:$0x1]
    %v159 = vperm.slane %v157, 0
    %v165 = vunpack.c.l.b16 %v152
    %v166 = vunpack.c.l.b16 %v153
    %v167 = vunpack.c.l.b16 %v154
    %v168 = vunpack.c.l.b16 %v155
    %v169 = vpack.c.b16 %v166, %v165
    %v170 = vpack.c.b16 %v168, %v167
    %v174 = vsel %vm52, %v150, 0
    %176 = vmatpush.bf16.msra.mxu0 0
    %177 = vmatpush.bf16.msra.mxu0 0
    %178 = vmatpush.bf16.msra.mxu0 0
    %179 = vmatpush.bf16.msra.mxu0 0
    %180 = vmatpush.bf16.msra.mxu0 0
    %181 = vmatpush.bf16.msra.mxu0 0
    %182 = vmatpush.bf16.msra.mxu0 %v170
    %183 = vmatpush.bf16.msra.mxu0 %v169
    %184 = vmatmul.bf16.gmra.mxu0 %v174
    %v185 = vpop.f32.mrf.mxu0
    %v186 = vadd.f32 %v159, %v185
    %v187 = vpop.f32.mrf.mxu0
    %188 = vdwg.mxu0
    %v189 = vmax.f32 %v186, 0.0
    %190 = vst [vmem:[%s3] sm:$0xff] %v189
    // Predicated region
    $region18: #{nn_forward.1} parent=1 // pred_check
      _
    $region19: #{nn_forward.1} parent=1 // pred_check_branch
      %192 = sbr.rel (0) target = $region21
    $region20: #{nn_forward.1} parent=1 // pred_region
      _
    $region21: #{nn_forward.1} parent=1 // pred_fallthru
      _
    // Predicated region
    $region22: #{nn_forward.1} parent=1 // pred_check
      _
    $region23: #{nn_forward.1} parent=1 // pred_check_branch
      %194 = sbr.rel (0) target = $region25
    $region24: #{nn_forward.1} parent=1 // pred_region
      _
    $region25: #{nn_forward.1} parent=1 // pred_fallthru
      _
    %195 = vsyncpa [#allocation3], 1

</llo_original>
